<compile_context>
chip_gen: v7x
topology: tpu7x:2x2x1
jax: 0.10.0
libtpu: 0.0.40
codegen_flags: <defaults>
</compile_context>

<pallas_src>
import jax
import jax.numpy as jnp
from jax.experimental import pallas as pl
from jax.experimental.pallas import tpu as pltpu


# ---------------------------------------------------------------------------
# Kernel bodies
# ---------------------------------------------------------------------------
def _stable_log1p(e):
    # Accurate log(1 + e) for e in [0, 1] using only exp/log/div/where (all lower on
    # Mosaic): classic compensated form  log1p(e) = log(u) * e / (u - 1),  u = 1 + e.
    u = 1.0 + e
    return jnp.where(u == 1.0, e, jnp.log(u) * e / (u - 1.0))


def _scores_to_logprobs(z, o_ref):
    # Per-candidate score: log_softmax(2-class logits)[:, 1] == log_sigmoid(z1 - z0)
    #   log_sigmoid(z) = min(z, 0) - log1p(exp(-|z|))          (numerically stable)
    s = jnp.minimum(z, 0.0) - _stable_log1p(jnp.exp(-jnp.abs(z)))
    # Listwise log_softmax over the top_k candidates of each query (last axis).
    m = jnp.max(s, axis=-1, keepdims=True)
    lse = m + jnp.log(jnp.sum(jnp.exp(s - m), axis=-1, keepdims=True))
    o_ref[...] = s - lse


def _rerank_mxu_kernel(x_ref, w_ref, b_ref, o_ref):
    # x_ref: [QT, K*H] native dtype    w_ref: [K*H, K] block-diag weight (stream dtype,
    # fully resident in VMEM)          b_ref: [1, 1] f32 SMEM     o_ref: [QT, K] f32
    z = jnp.dot(x_ref[...], w_ref[...], preferred_element_type=jnp.float32)
    _scores_to_logprobs(z + b_ref[0, 0], o_ref)


def _rerank_vpu_kernel(x_ref, w_ref, b_ref, o_ref):
    # Large-top_k path: x_ref: [QT, K, H] native dtype; w_ref: [1, 1, H] f32 resident.
    # VPU multiply + XLU last-axis reduce ride otherwise-idle slots (kernel is HBM-bound).
    z = jnp.sum(x_ref[...].astype(jnp.float32) * w_ref[...], axis=-1)   # [QT, K]
    _scores_to_logprobs(z + b_ref[0, 0], o_ref)


# ---------------------------------------------------------------------------
# Host-side wrapper
# ---------------------------------------------------------------------------
def _pick_query_tile(n_queries, row_bytes, sublane, need_sublane_align):
    """Largest divisor of n_queries giving ~8 MiB x-tiles, sublane-aligned when the
    query dim is a sublane dim, preferring >= 2 grid steps (pipelining + both v7x TCs)."""
    target_bytes = 8 << 20
    max_rows = max(1, target_bytes // max(1, row_bytes))
    divisors = [d for d in range(1, n_queries + 1) if n_queries % d == 0]

    def legal(qt):
        return (not need_sublane_align) or qt == n_queries or qt % sublane == 0

    for pred in (lambda qt: legal(qt) and qt <= max_rows and n_queries // qt >= 2,
                 lambda qt: legal(qt) and qt <= max_rows,
                 lambda qt: legal(qt)):
        cands = [d for d in divisors if pred(d)]
        if cands:
            return max(cands)
    return n_queries  # full-extent block is always legal


def rerank_forward(x, w, b, top_k, *, query_tile=None, force_path=None):
    """Fused Rerank forward.

    x: [B, H] pooled encoder features.  Stream at the narrowest acceptable dtype
       (bf16 preferred; do NOT pre-cast to f32) — this kernel is HBM-bandwidth bound
       on x, so halving bytes ~halves wall-clock on every TPU generation.
    w: [H, 2] 2-class head weight, b: [2] head bias.
    Returns [B // top_k, top_k] float32 listwise log-probabilities.
    """
    B, H = x.shape
    assert B % top_k == 0, "batch must be a multiple of top_k"
    N = B // top_k
    itemsize = jnp.dtype(x.dtype).itemsize
    sublane = {4: 8, 2: 16, 1: 32}.get(itemsize, 8)
    row_bytes = top_k * H * itemsize

    # Collapse the 2-class head:  z1 - z0 = x @ (w[:,1]-w[:,0]) + (b[1]-b[0]).
    w_eff = (w[:, 1] - w[:, 0]).astype(jnp.float32)                 # [H]
    b_eff = (b[1] - b[0]).astype(jnp.float32).reshape(1, 1)

    # Path choice: MXU block-diagonal trick only while its O(top_k^2 * H) weight stays
    # tiny (it lives fully resident in VMEM); otherwise VPU multiply + XLU reduce whose
    # weight is just H floats.  Both formulations are HBM-bound on streaming x.
    w_big_bytes = top_k * top_k * H * itemsize
    use_mxu = w_big_bytes <= (2 << 20)
    if force_path == "mxu":
        use_mxu = True
    elif force_path == "vpu":
        use_mxu = False

    if query_tile is None:
        query_tile = _pick_query_tile(N, row_bytes, sublane, need_sublane_align=use_mxu)
    assert N % query_tile == 0
    grid = (N // query_tile,)

    if use_mxu:
        # Free row-major reshape: [N*K, H] -> [N, K*H].  Block-diagonal head weight
        # routes candidate k's feature chunk to output column k; cast to the stream
        # dtype so the MXU stays on its native low-precision path.
        x_in = x.reshape(N, top_k * H)
        w_in = (jnp.eye(top_k, dtype=jnp.float32)[:, None, :]
                * w_eff[None, :, None]).reshape(top_k * H, top_k).astype(x.dtype)
        kernel = _rerank_mxu_kernel
        x_spec = pl.BlockSpec((query_tile, top_k * H), lambda i: (i, 0))
        w_resident_bytes = w_big_bytes
    else:
        # Free row-major reshape: [N*K, H] -> [N, K, H].  Weight is only H floats.
        x_in = x.reshape(N, top_k, H)
        w_in = w_eff.reshape(1, 1, H)
        kernel = _rerank_vpu_kernel
        x_spec = pl.BlockSpec((query_tile, top_k, H), lambda i: (i, 0, 0))
        w_resident_bytes = H * 4

    # Constant weight: fully resident in VMEM (no pipelining, no double-buffer copy).
    w_spec = pl.BlockSpec(memory_space=pltpu.MemorySpace.VMEM)
    # Bias: single scalar in SMEM.
    b_spec = pl.BlockSpec(memory_space=pltpu.MemorySpace.SMEM)
    out_spec = pl.BlockSpec((query_tile, top_k), lambda i: (i, 0))
    out_shape = jax.ShapeDtypeStruct((N, top_k), jnp.float32)

    # Size scoped VMEM from the actual tiles (2 x-buffers + resident weight + out),
    # so v5e's 16 MiB default does not cap the tile; clamp to 64 MiB for v7x.
    # NOTE: if profiling shows exposed inter-step DMA gaps (v5e, small tiles), a deeper
    # x pipeline via pipeline_mode=pl.Buffered(3) on x_spec is a cheap follow-up.
    x_tile_bytes = query_tile * row_bytes
    out_tile_bytes = query_tile * top_k * 4
    vmem_bytes = 2 * x_tile_bytes + w_resident_bytes + 2 * out_tile_bytes + (2 << 20)
    vmem_bytes = int(min(64 << 20, max(32 << 20, vmem_bytes)))

    return pl.pallas_call(
        kernel,
        out_shape=out_shape,
        grid=grid,
        in_specs=[x_spec, w_spec, b_spec],
        out_specs=out_spec,
        compiler_params=pltpu.CompilerParams(
            dimension_semantics=("parallel",),
            vmem_limit_bytes=vmem_bytes),
    )(x_in, w_in, b_eff)


# ---------------------------------------------------------------------------
# Pure-JAX reference (mirrors the PyTorch module)
# ---------------------------------------------------------------------------
def rerank_reference(x, w, b, top_k):
    logits = (x.astype(jnp.float32) @ w.astype(jnp.float32)
              + b.astype(jnp.float32))
    per_cand = jax.nn.log_softmax(logits, axis=-1)[:, 1]
    return jax.nn.log_softmax(per_cand.reshape(-1, top_k), axis=-1)


if __name__ == "__main__":
    # Small shapes: 32 queries x top_k=8 candidates, hidden=64 => B=256 encoder rows.
    num_queries, top_k, hidden = 32, 8, 64
    B = num_queries * top_k

    key = jax.random.PRNGKey(0)
    kx, kw, kb = jax.random.split(key, 3)
    x = jax.random.normal(kx, (B, hidden), dtype=jnp.float32)
    w = 0.1 * jax.random.normal(kw, (hidden, 2), dtype=jnp.float32)   # head weight
    b = 0.05 * jax.random.normal(kb, (2,), dtype=jnp.float32)         # head bias

    ref = rerank_reference(x, w, b, top_k)

    # f32 stream, MXU block-diagonal path (auto-chosen at these sizes).
    out = jax.block_until_ready(rerank_forward(x, w, b, top_k))
    assert out.shape == (num_queries, top_k)
    assert jnp.allclose(out, ref, atol=1e-4, rtol=1e-4), (out, ref)

    # f32 stream, forced VPU/XLU path (the large-top_k / v7x-VMEM fallback), for coverage.
    out_v = jax.block_until_ready(rerank_forward(x, w, b, top_k, force_path="vpu"))
    assert out_v.shape == (num_queries, top_k)
    assert jnp.allclose(out_v, ref, atol=1e-4, rtol=1e-4), (out_v, ref)

    # Native bf16 streaming path (half the HBM bytes for x; bf16 weight on the MXU,
    # f32 accumulate).  Compared to the f32 reference at bf16-level tolerance.
    xb = x.astype(jnp.bfloat16)
    out_b = jax.block_until_ready(rerank_forward(xb, w, b, top_k))
    ref_b = rerank_reference(xb, w, b, top_k)
    assert out_b.shape == (num_queries, top_k)
    assert jnp.allclose(out_b, ref_b, atol=2e-2, rtol=2e-2), (out_b, ref_b)

    print("KERNEL_OK")
</pallas_src>

<mosaic_0001>
module attributes {stable_mosaic.version = 11 : i64} {
  func.func @_rerank_mxu_kernel(%arg0: i32, %arg1: memref<16x512xf32, #tpu.memory_space<vmem>>, %arg2: memref<512x8xf32, #tpu.memory_space<vmem>>, %arg3: memref<1x1xf32, #tpu.memory_space<smem>>, %arg4: memref<16x8xf32, #tpu.memory_space<vmem>>) attributes {dimension_semantics = [#tpu.dimension_semantics<parallel>], iteration_bounds = array<i64: 2>, scalar_prefetch = 0 : i64, scratch_operands = 0 : i64, tpu.core_type = #tpu.core_type<tc>, window_params = [{transform_indices = @transform_0, window_bounds = array<i64: 16, 512>}, {pipeline_mode = #tpu.pipeline_mode<synchronous>, transform_indices = @transform_1, window_bounds = array<i64: 512, 8>}, {transform_indices = @transform_2, window_bounds = array<i64: 1, 1>}, {transform_indices = @transform_3, window_bounds = array<i64: 16, 8>}]} {
    %c0 = arith.constant 0 : index
    %c0_0 = arith.constant 0 : index
    %0 = vector.load %arg1[%c0, %c0_0] : memref<16x512xf32, #tpu.memory_space<vmem>>, vector<16x512xf32>
    %c0_1 = arith.constant 0 : index
    %c0_2 = arith.constant 0 : index
    %1 = vector.load %arg2[%c0_1, %c0_2] : memref<512x8xf32, #tpu.memory_space<vmem>>, vector<512x8xf32>
    %cst = arith.constant dense<0.000000e+00> : vector<16x8xf32>
    %2 = tpu.matmul %0, %1, %cst {dimension_numbers = #tpu.dot_dimension_numbers<[1], [0], [0], [1], [0, 0, 1, 1], [], []>} : vector<16x512xf32>, vector<512x8xf32>, vector<16x8xf32> -> vector<16x8xf32>
    %c0_3 = arith.constant 0 : index
    %c0_4 = arith.constant 0 : index
    %3 = memref.load %arg3[%c0_3, %c0_4] : memref<1x1xf32, #tpu.memory_space<smem>>
    %4 = vector.broadcast %3 : f32 to vector<16x8xf32>
    %5 = arith.addf %2, %4 : vector<16x8xf32>
    %cst_5 = arith.constant 0.000000e+00 : f32
    %6 = vector.broadcast %cst_5 : f32 to vector<16x8xf32>
    %7 = arith.minimumf %5, %6 : vector<16x8xf32>
    %8 = math.absf %5 : vector<16x8xf32>
    %cst_6 = arith.constant 0.000000e+00 : f32
    %9 = vector.broadcast %cst_6 : f32 to vector<16x8xf32>
    %10 = arith.subf %9, %8 : vector<16x8xf32>
    %11 = math.exp %10 : vector<16x8xf32>
    %cst_7 = arith.constant 1.000000e+00 : f32
    %12 = vector.broadcast %cst_7 : f32 to vector<16x8xf32>
    %13 = arith.addf %12, %11 : vector<16x8xf32>
    %cst_8 = arith.constant 1.000000e+00 : f32
    %14 = vector.broadcast %cst_8 : f32 to vector<16x8xf32>
    %15 = arith.cmpf oeq, %13, %14 : vector<16x8xf32>
    %16 = math.log %13 : vector<16x8xf32>
    %17 = arith.mulf %16, %11 : vector<16x8xf32>
    %cst_9 = arith.constant 1.000000e+00 : f32
    %18 = vector.broadcast %cst_9 : f32 to vector<16x8xf32>
    %19 = arith.subf %13, %18 : vector<16x8xf32>
    %20 = arith.divf %17, %19 : vector<16x8xf32>
    %21 = arith.select %15, %11, %20 : vector<16x8xi1>, vector<16x8xf32>
    %22 = arith.subf %7, %21 : vector<16x8xf32>
    %cst_10 = arith.constant dense<0xFF800000> : vector<16xf32>
    %23 = vector.multi_reduction <maximumf>, %22, %cst_10 [1] : vector<16x8xf32> to vector<16xf32>
    %24 = vector.shape_cast %23 : vector<16xf32> to vector<16x1xf32>
    %25 = vector.broadcast %24 : vector<16x1xf32> to vector<16x8xf32>
    %26 = arith.subf %22, %25 : vector<16x8xf32>
    %27 = math.exp %26 : vector<16x8xf32>
    %cst_11 = arith.constant dense<0.000000e+00> : vector<16xf32>
    %28 = vector.multi_reduction <add>, %27, %cst_11 [1] : vector<16x8xf32> to vector<16xf32>
    %29 = vector.shape_cast %28 : vector<16xf32> to vector<16x1xf32>
    %30 = math.log %29 : vector<16x1xf32>
    %31 = arith.addf %24, %30 : vector<16x1xf32>
    %32 = vector.broadcast %31 : vector<16x1xf32> to vector<16x8xf32>
    %33 = arith.subf %22, %32 : vector<16x8xf32>
    %c0_12 = arith.constant 0 : index
    %c0_13 = arith.constant 0 : index
    %34 = vector.load %arg4[%c0_12, %c0_13] : memref<16x8xf32, #tpu.memory_space<vmem>>, vector<16x8xf32>
    tpu.vector_store %arg4[%c0_12, %c0_13], %33 {strides = array<i32>} : memref<16x8xf32, #tpu.memory_space<vmem>>, vector<16x8xf32>,
    return
  }
  func.func @transform_0(%arg0: i32) -> (i32, i32) {
    %c0_i32 = arith.constant 0 : i32
    %c0_i32_0 = arith.constant 0 : i32
    return %arg0, %c0_i32 : i32, i32
  }
  func.func @transform_1(%arg0: i32) -> (i32, i32) {
    %c0_i32 = arith.constant 0 : i32
    %c0_i32_0 = arith.constant 0 : i32
    %c0_i32_1 = arith.constant 0 : i32
    return %c0_i32, %c0_i32_0 : i32, i32
  }
  func.func @transform_2(%arg0: i32) -> (i32, i32) {
    %c0_i32 = arith.constant 0 : i32
    %c0_i32_0 = arith.constant 0 : i32
    %c0_i32_1 = arith.constant 0 : i32
    return %c0_i32, %c0_i32_0 : i32, i32
  }
  func.func @transform_3(%arg0: i32) -> (i32, i32) {
    %c0_i32 = arith.constant 0 : i32
    %c0_i32_0 = arith.constant 0 : i32
    return %arg0, %c0_i32 : i32, i32
  }
}

</mosaic_0001>

<llo_original>
// kernel: tpu_custom_call.1
$region0: #{tpu_custom_call.1}
  #allocation0 [shape = 'u32[]', space=smem, size = 0x4, offset = 0x4, fixed_abs, tag = 'smem constant byte address 0x4 - core index']
  #allocation1 [shape = 'u32[144,128]{1,0:T(1,128)}', space=vmem, size = 0x12000, scoped, tag = 'internal scratch']
  #allocation2 [shape = 'f32[1,1]{1,0:T(1,128)S(6)}', space=smem, size = 0x200, scoped, tag = 'scoped memory for tpu_custom_call.1']
  %s0 = inlined_call_operand.vmem [shape: f32[32,512], index: 0, kind: input, shape index: {}]
  %s1 = inlined_call_operand.vmem [shape: f32[512,8], index: 1, kind: input, shape index: {}]
  %s2 = inlined_call_operand.<no memory space> [shape: f32[1,1], index: 2, kind: input, shape index: {}]
  %s3 = inlined_call_operand.vmem [shape: f32[32,8], index: 3, kind: output, shape index: {}]
  %s4 = sld [smem:[#allocation0]]
  $region45: #{tpu_custom_call.1} parent=0
    _
  %s6 = ssub.s32 1, %s4
  %s7 = scalar_select 0, %s6, %s4
  %8 = sst [smem:[#allocation2]] %s2
  loop: start=0, step=1, limit=4
  $region2: #{tpu_custom_call.1} parent=0 // loop_pre_header
    _
  $region3: #{tpu_custom_call.1} parent=0 // loop_header
    %s10 = sphi 0, %s14
    %p11 = scmp.ge.s32.totalorder %s10, 4
    %s20 = sphi 0, %s22
    %s23 = sphi 0, %s20
    %s24 = sphi 0, %s23
    %s40 = sphi 0, %s24
    %s44 = sphi 0, %s44
    %s46 = sphi 0, %s44
    %s47 = sphi 0, %s46
    %s61 = sphi 0, %s47
    %s65 = sphi 0, %s65
    %s67 = sphi 0, %s65
    %s68 = sphi 0, %s67
    %s82 = sphi 0, %s68
    %s88 = sphi 0, %s90
    %s91 = sphi 0, %s88
    %s92 = sphi 0, %s91
    %s108 = sphi 0, %s92
  $region4: #{tpu_custom_call.1} parent=0 // loop_header_branch
    %13 = sbr.rel (%p11) target = $region8
  $region5: #{tpu_custom_call.1} parent=0 // loop_body
    %s15 = ssub.s32 %s10, 1
    %s16 = ssub.s32 %s10, 2
    %s17 = sadd.s32 %s10, 1
    %s18 = ssub.s32 %s10, %s17
    %p19 = scmp.eq.s32.totalorder %s18, 0
    %s21 = sadd.s32 %s20, 1
    %s22 = scalar_select %p19, %s20, %s21
    %p25 = pneg %p19
    %p26 = scmp.eq.s32.totalorder %s10, 1
    %p27 = por %p25, %p26
    %p28 = scmp.ne.s32.totalorder %s20, %s23
    %p29 = scmp.eq.s32.totalorder %s10, 0
    %p30 = por %p28, %p29
    %p31 = scmp.ne.s32.totalorder %s20, %s23
    %p32 = scmp.eq.s32.totalorder %s15, 1
    %p33 = por %p31, %p32
    %p34 = scmp.ne.s32.totalorder %s23, %s24
    %p35 = scmp.eq.s32.totalorder %s15, 0
    %p36 = por %p34, %p35
    %p37 = scmp.ne.s32.totalorder %s23, %s24
    %p38 = scmp.eq.s32.totalorder %s16, 1
    %p39 = por %p37, %p38
    %p41 = scmp.ne.s32.totalorder %s24, %s40
    %p42 = scmp.eq.s32.totalorder %s16, 0
    %p43 = por %p41, %p42
    %s45 = sadd.s32 %s44, 1
    %p48 = scmp.eq.s32.totalorder %s10, 1
    %p49 = scmp.ne.s32.totalorder %s44, %s46
    %p50 = scmp.eq.s32.totalorder %s10, 0
    %p51 = por %p49, %p50
    %p52 = scmp.ne.s32.totalorder %s44, %s46
    %p53 = scmp.eq.s32.totalorder %s15, 1
    %p54 = por %p52, %p53
    %p55 = scmp.ne.s32.totalorder %s46, %s47
    %p56 = scmp.eq.s32.totalorder %s15, 0
    %p57 = por %p55, %p56
    %p58 = scmp.ne.s32.totalorder %s46, %s47
    %p59 = scmp.eq.s32.totalorder %s16, 1
    %p60 = por %p58, %p59
    %p62 = scmp.ne.s32.totalorder %s47, %s61
    %p63 = scmp.eq.s32.totalorder %s16, 0
    %p64 = por %p62, %p63
    %s66 = sadd.s32 %s65, 1
    %p69 = scmp.eq.s32.totalorder %s10, 1
    %p70 = scmp.ne.s32.totalorder %s65, %s67
    %p71 = scmp.eq.s32.totalorder %s10, 0
    %p72 = por %p70, %p71
    %p73 = scmp.ne.s32.totalorder %s65, %s67
    %p74 = scmp.eq.s32.totalorder %s15, 1
    %p75 = por %p73, %p74
    %p76 = scmp.ne.s32.totalorder %s67, %s68
    %p77 = scmp.eq.s32.totalorder %s15, 0
    %p78 = por %p76, %p77
    %p79 = scmp.ne.s32.totalorder %s67, %s68
    %p80 = scmp.eq.s32.totalorder %s16, 1
    %p81 = por %p79, %p80
    %p83 = scmp.ne.s32.totalorder %s68, %s82
    %p84 = scmp.eq.s32.totalorder %s16, 0
    %p85 = por %p83, %p84
    %s86 = ssub.s32 %s10, %s17
    %p87 = scmp.eq.s32.totalorder %s86, 0
    %s89 = sadd.s32 %s88, 1
    %s90 = scalar_select %p87, %s88, %s89
    %p93 = pneg %p87
    %p94 = scmp.eq.s32.totalorder %s10, 1
    %p95 = por %p93, %p94
    %p96 = scmp.ne.s32.totalorder %s88, %s91
    %p97 = scmp.eq.s32.totalorder %s10, 0
    %p98 = por %p96, %p97
    %p99 = scmp.ne.s32.totalorder %s88, %s91
    %p100 = scmp.eq.s32.totalorder %s15, 1
    %p101 = por %p99, %p100
    %p102 = scmp.ne.s32.totalorder %s91, %s92
    %p103 = scmp.eq.s32.totalorder %s15, 0
    %p104 = por %p102, %p103
    %p105 = scmp.ne.s32.totalorder %s91, %s92
    %p106 = scmp.eq.s32.totalorder %s16, 1
    %p107 = por %p105, %p106
    %p109 = scmp.ne.s32.totalorder %s92, %s108
    %p110 = scmp.eq.s32.totalorder %s16, 0
    %p111 = por %p109, %p110
    %p112 = scmp.le.s32.totalorder 1, %s10
    %p113 = scmp.lt.s32.totalorder %s10, 3
    %p114 = pnand %p112, %p113
    %p115 = pneg %p114
    // Predicated region
    $region9: #{tpu_custom_call.1} parent=5 // pred_check
      _
    $region10: #{tpu_custom_call.1} parent=5 // pred_check_branch
      %117 = sbr.rel (%p114) target = $region12
    $region11: #{tpu_custom_call.1} parent=5 // pred_region
      %s118 = ssub.s32 %s10, 1
      // Predicated region
      $region13: #{tpu_custom_call.1} parent=11 // pred_check
        %p119 = pneg %p57
      $region14: #{tpu_custom_call.1} parent=11 // pred_check_branch
        %121 = sbr.rel (%p119) target = $region16
      $region15: #{tpu_custom_call.1} parent=11 // pred_region
        _
      $region16: #{tpu_custom_call.1} parent=11 // pred_fallthru
        _
      // Predicated region
      $region17: #{tpu_custom_call.1} parent=11 // pred_check
        %p122 = pneg %p78
      $region18: #{tpu_custom_call.1} parent=11 // pred_check_branch
        %124 = sbr.rel (%p122) target = $region20
      $region19: #{tpu_custom_call.1} parent=11 // pred_region
        _
      $region20: #{tpu_custom_call.1} parent=11 // pred_fallthru
        _
    $region12: #{tpu_custom_call.1} parent=5 // pred_fallthru
      _
    %p125 = scmp.lt.s32.totalorder %s10, 2
    // Predicated region
    $region21: #{tpu_custom_call.1} parent=5 // pred_check
      %p126 = pneg %p125
    $region22: #{tpu_custom_call.1} parent=5 // pred_check_branch
      %128 = sbr.rel (%p126) target = $region24
    $region23: #{tpu_custom_call.1} parent=5 // pred_region
      // Predicated region
      $region25: #{tpu_custom_call.1} parent=23 // pred_check
        %p129 = pneg %p30
      $region26: #{tpu_custom_call.1} parent=23 // pred_check_branch
        %131 = sbr.rel (%p129) target = $region28
      $region27: #{tpu_custom_call.1} parent=23 // pred_region
        %s132 = smul.u32 2, %s10
        %p133 = scmp.lt.s32.totalorder %s132, 3
        %s134 = scalar_select %p133, %s132, 3
        %s135 = smul.addr %s134, 4
        %s136 = smul.addr %s135, 8
        %s137 = scalar_lea.vmem %s0, %s136
        %s138 = smul.u32 2, %s10
      $region28: #{tpu_custom_call.1} parent=23 // pred_fallthru
        _
    $region24: #{tpu_custom_call.1} parent=5 // pred_fallthru
      _
    %p139 = scmp.le.s32.totalorder 1, %s10
    %p140 = scmp.lt.s32.totalorder %s10, 3
    %p141 = pnand %p139, %p140
    %p142 = pneg %p141
    // Predicated region
    $region29: #{tpu_custom_call.1} parent=5 // pred_check
      _
    $region30: #{tpu_custom_call.1} parent=5 // pred_check_branch
      %144 = sbr.rel (%p141) target = $region32
    $region31: #{tpu_custom_call.1} parent=5 // pred_region
      %s145 = ssub.s32 %s10, 1
      %s146 = smul.u32 2, %s15
      %p147 = scmp.lt.s32.totalorder %s146, 3
      %s148 = scalar_select %p147, %s146, 3
      %s149 = smul.addr %s148, 4
      %s150 = smul.addr %s149, 8
      %s151 = scalar_lea.vmem %s0, %s150
      %p152 = pneg %p36
      %p153 = pneg %p33
      %p154 = pneg %p57
      %p155 = pneg %p54
      %p156 = pneg %p78
      %p157 = pneg %p75
      %p158 = pneg %p104
      %p159 = pneg %p101
      %s160 = smul.u32 2, %s15
      %p161 = scmp.lt.s32.totalorder %s160, 3
      %s162 = scalar_select %p161, %s160, 3
      %s163 = smul.addr %s162, 8
      %s164 = scalar_lea.vmem %s3, %s163
      %s165 = smul.u32 2, %s15
      %p166 = scmp.lt.s32.totalorder %s165, 3
      %s167 = scalar_select %p166, %s165, 3
      %s168 = smul.addr %s167, 4
      %s169 = smul.addr %s168, 8
      %s170 = scalar_lea.vmem %s0, %s169
      %s171 = smul.u32 2, %s15
      %s172 = smul.u32 2, %s15
      %p173 = scmp.lt.s32.totalorder %s172, 3
      %s174 = scalar_select %p173, %s172, 3
      %s175 = smul.addr %s174, 8
      %s176 = scalar_lea.vmem %s3, %s175
      %s177 = smul.u32 2, %s15
      %v178 = vld [vmem:[%s170] sm:$0xff]
      %v179 = vld [vmem:[%s170 + $0x8] sm:$0xff]
      %v180 = vld [vmem:[%s170 + $0x10] sm:$0xff]
      %v181 = vld [vmem:[%s170 + $0x18] sm:$0xff]
      %v182 = vld [vmem:[%s170 + $0x20] sm:$0xff]
      %v183 = vld [vmem:[%s170 + $0x28] sm:$0xff]
      %v184 = vld [vmem:[%s170 + $0x30] sm:$0xff]
      %v185 = vld [vmem:[%s170 + $0x38] sm:$0xff]
      %v186 = vld [vmem:[%s1] sm:$0xff]
      %v187 = vld [vmem:[%s1 + $0x8] sm:$0xff]
      %v188 = vld [vmem:[%s1 + $0x10] sm:$0xff]
      %v189 = vld [vmem:[%s1 + $0x18] sm:$0xff]
      %v190 = vld [vmem:[%s1 + $0x20] sm:$0xff]
      %v191 = vld [vmem:[%s1 + $0x28] sm:$0xff]
      %v192 = vld [vmem:[%s1 + $0x30] sm:$0xff]
      %v193 = vld [vmem:[%s1 + $0x38] sm:$0xff]
      %v194 = vld [vmem:[%s1 + $0x40] sm:$0xff]
      %v195 = vld [vmem:[%s1 + $0x48] sm:$0xff]
      %v196 = vld [vmem:[%s1 + $0x50] sm:$0xff]
      %v197 = vld [vmem:[%s1 + $0x58] sm:$0xff]
      %v198 = vld [vmem:[%s1 + $0x60] sm:$0xff]
      %v199 = vld [vmem:[%s1 + $0x68] sm:$0xff]
      %v200 = vld [vmem:[%s1 + $0x70] sm:$0xff]
      %v201 = vld [vmem:[%s1 + $0x78] sm:$0xff]
      %v202 = vld [vmem:[%s1 + $0x80] sm:$0xff]
      %v203 = vld [vmem:[%s1 + $0x88] sm:$0xff]
      %v204 = vld [vmem:[%s1 + $0x90] sm:$0xff]
      %v205 = vld [vmem:[%s1 + $0x98] sm:$0xff]
      %v206 = vld [vmem:[%s1 + $0xa0] sm:$0xff]
      %v207 = vld [vmem:[%s1 + $0xa8] sm:$0xff]
      %v208 = vld [vmem:[%s1 + $0xb0] sm:$0xff]
      %v209 = vld [vmem:[%s1 + $0xb8] sm:$0xff]
      %v210 = vld [vmem:[%s1 + $0xc0] sm:$0xff]
      %v211 = vld [vmem:[%s1 + $0xc8] sm:$0xff]
      %v212 = vld [vmem:[%s1 + $0xd0] sm:$0xff]
      %v213 = vld [vmem:[%s1 + $0xd8] sm:$0xff]
      %v214 = vld [vmem:[%s1 + $0xe0] sm:$0xff]
      %v215 = vld [vmem:[%s1 + $0xe8] sm:$0xff]
      %v216 = vld [vmem:[%s1 + $0xf0] sm:$0xff]
      %v217 = vld [vmem:[%s1 + $0xf8] sm:$0xff]
      %v218 = vld [vmem:[%s1 + $0x100] sm:$0xff]
      %v219 = vld [vmem:[%s1 + $0x108] sm:$0xff]
      %v220 = vld [vmem:[%s1 + $0x110] sm:$0xff]
      %v221 = vld [vmem:[%s1 + $0x118] sm:$0xff]
      %v222 = vld [vmem:[%s1 + $0x120] sm:$0xff]
      %v223 = vld [vmem:[%s1 + $0x128] sm:$0xff]
      %v224 = vld [vmem:[%s1 + $0x130] sm:$0xff]
      %v225 = vld [vmem:[%s1 + $0x138] sm:$0xff]
      %v226 = vld [vmem:[%s1 + $0x140] sm:$0xff]
      %v227 = vld [vmem:[%s1 + $0x148] sm:$0xff]
      %v228 = vld [vmem:[%s1 + $0x150] sm:$0xff]
      %v229 = vld [vmem:[%s1 + $0x158] sm:$0xff]
      %v230 = vld [vmem:[%s1 + $0x160] sm:$0xff]
      %v231 = vld [vmem:[%s1 + $0x168] sm:$0xff]
      %v232 = vld [vmem:[%s1 + $0x170] sm:$0xff]
      %v233 = vld [vmem:[%s1 + $0x178] sm:$0xff]
      %v234 = vld [vmem:[%s1 + $0x180] sm:$0xff]
      %v235 = vld [vmem:[%s1 + $0x188] sm:$0xff]
      %v236 = vld [vmem:[%s1 + $0x190] sm:$0xff]
      %v237 = vld [vmem:[%s1 + $0x198] sm:$0xff]
      %v238 = vld [vmem:[%s1 + $0x1a0] sm:$0xff]
      %v239 = vld [vmem:[%s1 + $0x1a8] sm:$0xff]
      %v240 = vld [vmem:[%s1 + $0x1b0] sm:$0xff]
      %v241 = vld [vmem:[%s1 + $0x1b8] sm:$0xff]
      %v242 = vld [vmem:[%s1 + $0x1c0] sm:$0xff]
      %v243 = vld [vmem:[%s1 + $0x1c8] sm:$0xff]
      %v244 = vld [vmem:[%s1 + $0x1d0] sm:$0xff]
      %v245 = vld [vmem:[%s1 + $0x1d8] sm:$0xff]
      %v246 = vld [vmem:[%s1 + $0x1e0] sm:$0xff]
      %v247 = vld [vmem:[%s1 + $0x1e8] sm:$0xff]
      %v248 = vld [vmem:[%s1 + $0x1f0] sm:$0xff]
      %v249 = vld [vmem:[%s1 + $0x1f8] sm:$0xff]
      %s250 = sld [smem:[#allocation2]]
      %v251 = vstv %s250
      %252 = vmatprep.subr.mxu0 0.0
      %253 = vmatpush1.msra.mxu0 %v186
      %254 = vmatprep.subr.mxu0 0.0
      %255 = vmatpush1.msra.mxu0 %v187
      %256 = vmatprep.subr.mxu0 0.0
      %257 = vmatpush1.msra.mxu0 %v188
      %258 = vmatprep.subr.mxu0 0.0
      %259 = vmatpush1.msra.mxu0 %v189
      %260 = vmatprep.subr.mxu0 0.0
      %261 = vmatpush1.msra.mxu0 %v190
      %262 = vmatprep.subr.mxu0 0.0
      %263 = vmatpush1.msra.mxu0 %v191
      %264 = vmatprep.subr.mxu0 0.0
      %265 = vmatpush1.msra.mxu0 %v192
      %266 = vmatprep.subr.mxu0 0.0
      %267 = vmatpush1.msra.mxu0 %v193
      %268 = vmatprep.subr.mxu0 0.0
      %269 = vmatpush1.msra.mxu0 %v194
      %270 = vmatprep.subr.mxu0 0.0
      %271 = vmatpush1.msra.mxu0 %v195
      %272 = vmatprep.subr.mxu0 0.0
      %273 = vmatpush1.msra.mxu0 %v196
      %274 = vmatprep.subr.mxu0 0.0
      %275 = vmatpush1.msra.mxu0 %v197
      %276 = vmatprep.subr.mxu0 0.0
      %277 = vmatpush1.msra.mxu0 %v198
      %278 = vmatprep.subr.mxu0 0.0
      %279 = vmatpush1.msra.mxu0 %v199
      %280 = vmatprep.subr.mxu0 0.0
      %281 = vmatpush1.msra.mxu0 %v200
      %282 = vmatprep.subr.mxu0 0.0
      %283 = vmatpush1.msra.mxu0 %v201
      %284 = vmatprep.subr.mxu0 0.0
      %285 = vmatpush1.msra.mxu0 %v202
      %286 = vmatprep.subr.mxu0 0.0
      %287 = vmatpush1.msra.mxu0 %v203
      %288 = vmatprep.subr.mxu0 0.0
      %289 = vmatpush1.msra.mxu0 %v204
      %290 = vmatprep.subr.mxu0 0.0
      %291 = vmatpush1.msra.mxu0 %v205
      %292 = vmatprep.subr.mxu0 0.0
      %293 = vmatpush1.msra.mxu0 %v206
      %294 = vmatprep.subr.mxu0 0.0
      %295 = vmatpush1.msra.mxu0 %v207
      %296 = vmatprep.subr.mxu0 0.0
      %297 = vmatpush1.msra.mxu0 %v208
      %298 = vmatprep.subr.mxu0 0.0
      %299 = vmatpush1.msra.mxu0 %v209
      %300 = vmatprep.subr.mxu0 0.0
      %301 = vmatpush1.msra.mxu0 %v210
      %302 = vmatprep.subr.mxu0 0.0
      %303 = vmatpush1.msra.mxu0 %v211
      %304 = vmatprep.subr.mxu0 0.0
      %305 = vmatpush1.msra.mxu0 %v212
      %306 = vmatprep.subr.mxu0 0.0
      %307 = vmatpush1.msra.mxu0 %v213
      %308 = vmatprep.subr.mxu0 0.0
      %309 = vmatpush1.msra.mxu0 %v214
      %310 = vmatprep.subr.mxu0 0.0
      %311 = vmatpush1.msra.mxu0 %v215
      %312 = vmatprep.subr.mxu0 0.0
      %313 = vmatpush1.msra.mxu0 %v216
      %314 = vmatprep.subr.mxu0 0.0
      %315 = vmatpush1.msra.mxu0 %v217
      %316 = vmatprep.mubr.f32.mxu0 %v179
      %317 = vmatmul.mubr.f32.gmra.mrb[0].mxu0 %v178
      %v318 = vpop.f32.mrb[0].mxu0
      %v319 = vadd.f32 %v251, %v318
      %v320 = vpop.f32.mrb[0].mxu0
      %321 = vmatprep.mubr.f32.mxu0 %v183
      %322 = vmatmul.mubr.f32.gmra.mrb[0].mxu0 %v182
      %v323 = vpop.f32.mrb[0].mxu0
      %v324 = vadd.f32 %v251, %v323
      %v325 = vpop.f32.mrb[0].mxu0
      %326 = vdwg.mxu0
      %327 = vmatprep.subr.mxu0 0.0
      %328 = vmatpush1.msra.mxu0 %v218
      %329 = vmatprep.subr.mxu0 0.0
      %330 = vmatpush1.msra.mxu0 %v219
      %331 = vmatprep.subr.mxu0 0.0
      %332 = vmatpush1.msra.mxu0 %v220
      %333 = vmatprep.subr.mxu0 0.0
      %334 = vmatpush1.msra.mxu0 %v221
      %335 = vmatprep.subr.mxu0 0.0
      %336 = vmatpush1.msra.mxu0 %v222
      %337 = vmatprep.subr.mxu0 0.0
      %338 = vmatpush1.msra.mxu0 %v223
      %339 = vmatprep.subr.mxu0 0.0
      %340 = vmatpush1.msra.mxu0 %v224
      %341 = vmatprep.subr.mxu0 0.0
      %342 = vmatpush1.msra.mxu0 %v225
      %343 = vmatprep.subr.mxu0 0.0
      %344 = vmatpush1.msra.mxu0 %v226
      %345 = vmatprep.subr.mxu0 0.0
      %346 = vmatpush1.msra.mxu0 %v227
      %347 = vmatprep.subr.mxu0 0.0
      %348 = vmatpush1.msra.mxu0 %v228
      %349 = vmatprep.subr.mxu0 0.0
      %350 = vmatpush1.msra.mxu0 %v229
      %351 = vmatprep.subr.mxu0 0.0
      %352 = vmatpush1.msra.mxu0 %v230
      %353 = vmatprep.subr.mxu0 0.0
      %354 = vmatpush1.msra.mxu0 %v231
      %355 = vmatprep.subr.mxu0 0.0
      %356 = vmatpush1.msra.mxu0 %v232
      %357 = vmatprep.subr.mxu0 0.0
      %358 = vmatpush1.msra.mxu0 %v233
      %359 = vmatprep.subr.mxu0 0.0
      %360 = vmatpush1.msra.mxu0 %v234
      %361 = vmatprep.subr.mxu0 0.0
      %362 = vmatpush1.msra.mxu0 %v235
      %363 = vmatprep.subr.mxu0 0.0
      %364 = vmatpush1.msra.mxu0 %v236
      %365 = vmatprep.subr.mxu0 0.0
      %366 = vmatpush1.msra.mxu0 %v237
      %367 = vmatprep.subr.mxu0 0.0
      %368 = vmatpush1.msra.mxu0 %v238
      %369 = vmatprep.subr.mxu0 0.0
      %370 = vmatpush1.msra.mxu0 %v239
      %371 = vmatprep.subr.mxu0 0.0
      %372 = vmatpush1.msra.mxu0 %v240
      %373 = vmatprep.subr.mxu0 0.0
      %374 = vmatpush1.msra.mxu0 %v241
      %375 = vmatprep.subr.mxu0 0.0
      %376 = vmatpush1.msra.mxu0 %v242
      %377 = vmatprep.subr.mxu0 0.0
      %378 = vmatpush1.msra.mxu0 %v243
      %379 = vmatprep.subr.mxu0 0.0
      %380 = vmatpush1.msra.mxu0 %v244
      %381 = vmatprep.subr.mxu0 0.0
      %382 = vmatpush1.msra.mxu0 %v245
      %383 = vmatprep.subr.mxu0 0.0
      %384 = vmatpush1.msra.mxu0 %v246
      %385 = vmatprep.subr.mxu0 0.0
      %386 = vmatpush1.msra.mxu0 %v247
      %387 = vmatprep.subr.mxu0 0.0
      %388 = vmatpush1.msra.mxu0 %v248
      %389 = vmatprep.subr.mxu0 0.0
      %390 = vmatpush1.msra.mxu0 %v249
      %391 = vmatprep.mubr.f32.mxu0 %v181
      %392 = vmatmul.mubr.f32.gmra.mrb[0].mxu0 %v180
      %v393 = vpop.f32.mrb[0].mxu0
      %v394 = vadd.f32 %v319, %v393
      %v395 = vpop.f32.mrb[0].mxu0
      %396 = vmatprep.mubr.f32.mxu0 %v185
      %397 = vmatmul.mubr.f32.gmra.mrb[0].mxu0 %v184
      %v398 = vpop.f32.mrb[0].mxu0
      %v399 = vadd.f32 %v324, %v398
      %v400 = vpop.f32.mrb[0].mxu0
      %401 = vdwg.mxu0
      %v402 = vmin.f32 %v394, 0.0
      %v403 = vmin.f32 %v399, 0.0
      %v404 = vand.u32 2147483647, %v394
      %v405 = vand.u32 2147483647, %v399
      %v406 = vsub.f32 0.0, %v404
      %v407 = vsub.f32 0.0, %v405
      %v408 = vmul.f32 %v406, 1.442695
      %v409 = vpow.pop %v408
      %v410 = vmul.f32 %v407, 1.442695
      %v411 = vpow.pop %v410
      %v412 = vadd.f32 %v409, 1.0
      %v413 = vadd.f32 %v411, 1.0
      %vm414 = vcmp.eq.f32.partialorder %v412, 1.0
      %vm415 = vcmp.eq.f32.partialorder %v413, 1.0
      %v416 = vlog2.pop %v412
      %v417 = vmul.f32 %v416, 0.6931472
      %v418 = vlog2.pop %v413
      %v419 = vmul.f32 %v418, 0.6931472
      %v420 = vmul.f32 %v417, %v409
      %v421 = vmul.f32 %v419, %v411
      %v422 = vsub.f32 %v412, 1.0
      %v423 = vsub.f32 %v413, 1.0
      %v424 = vrcp.pop %v422
      %v425 = vmul.f32 %v420, %v424
      %v426 = vrcp.pop %v423
      %v427 = vmul.f32 %v421, %v426
      %v428 = vsel %vm414, %v409, %v425
      %v429 = vsel %vm415, %v411, %v427
      %v430 = vsub.f32 %v402, %v428
      %v431 = vsub.f32 %v403, %v429
      %vm432 = vcmask 64512
      %v433 = vsel %vm432, %v430, -inf
      %434 = vmax.xlane.f32.xlu0 %v433
      %v435 = vpop.xlane.xlu0 %434
      %v436 = vsel %vm432, %v431, -inf
      %437 = vmax.xlane.f32.xlu0 %v436
      %v438 = vpop.xlane.xlu0 %437
      %v439 = vsub.f32 %v430, %v435
      %v440 = vsub.f32 %v431, %v438
      %v441 = vmul.f32 %v439, 1.442695
      %v442 = vpow.pop %v441
      %v443 = vmul.f32 %v440, 1.442695
      %v444 = vpow.pop %v443
      %v445 = vsel %vm432, %v442, 0.0
      %446 = vadd.xlane.f32.xlu0 %v445
      %v447 = vpop.xlane.xlu0 %446
      %v448 = vsel %vm432, %v444, 0.0
      %449 = vadd.xlane.f32.xlu0 %v448
      %v450 = vpop.xlane.xlu0 %449
      %v451 = vlog2.pop %v447
      %v452 = vmul.f32 %v451, 0.6931472
      %v453 = vlog2.pop %v450
      %v454 = vmul.f32 %v453, 0.6931472
      %v455 = vadd.f32 %v435, %v452
      %v456 = vadd.f32 %v438, %v454
      %v457 = vsub.f32 %v430, %v455
      %v458 = vsub.f32 %v431, %v456
      %459 = vst.msk [vmem:[%s176] sm:$0xff] %vm432, %v457
      %460 = vst.msk [vmem:[%s176 + $0x8] sm:$0xff] %vm432, %v458
      %s461 = smul.u32 2, %s15
      %p462 = scmp.lt.s32.totalorder %s461, 3
      %s463 = scalar_select %p462, %s461, 3
      %s464 = smul.addr %s463, 8
      %s465 = scalar_lea.vmem %s3, %s464
      // Predicated region
      $region33: #{tpu_custom_call.1} parent=31 // pred_check
        %p466 = pneg %p101
      $region34: #{tpu_custom_call.1} parent=31 // pred_check_branch
        %468 = sbr.rel (%p466) target = $region36
      $region35: #{tpu_custom_call.1} parent=31 // pred_region
        %s469 = smul.u32 2, %s15
      $region36: #{tpu_custom_call.1} parent=31 // pred_fallthru
        _
    $region32: #{tpu_custom_call.1} parent=5 // pred_fallthru
      _
    %p470 = scmp.le.s32.totalorder 2, %s10
    // Predicated region
    $region37: #{tpu_custom_call.1} parent=5 // pred_check
      %p471 = pneg %p470
    $region38: #{tpu_custom_call.1} parent=5 // pred_check_branch
      %473 = sbr.rel (%p471) target = $region40
    $region39: #{tpu_custom_call.1} parent=5 // pred_region
      %s474 = ssub.s32 %s10, 2
      // Predicated region
      $region41: #{tpu_custom_call.1} parent=39 // pred_check
        %p475 = pneg %p107
      $region42: #{tpu_custom_call.1} parent=39 // pred_check_branch
        %477 = sbr.rel (%p475) target = $region44
      $region43: #{tpu_custom_call.1} parent=39 // pred_region
        %s478 = smul.u32 2, %s16
        %p479 = scmp.lt.s32.totalorder %s478, 3
        %s480 = scalar_select %p479, %s478, 3
        %s481 = smul.addr %s480, 8
        %s482 = scalar_lea.vmem %s3, %s481
      $region44: #{tpu_custom_call.1} parent=39 // pred_fallthru
        _
    $region40: #{tpu_custom_call.1} parent=5 // pred_fallthru
      _
  $region6: #{tpu_custom_call.1} parent=0 // loop_footer
    %s14 = sadd.s32 1, %s10
  $region7: #{tpu_custom_call.1} parent=0 // loop_footer_branch
    %9 = sbr.rel target = $region3
  $region8: #{tpu_custom_call.1} parent=0 // loop_exit
    _

</llo_original>
